<compile_context>
chip_gen: v7x
topology: tpu7x:2x2x1
jax: 0.10.0
libtpu: 0.0.40
codegen_flags: <defaults>
</compile_context>

<pallas_src>
import jax
import jax.numpy as jnp
from jax.experimental import pallas as pl
from jax.experimental.pallas import tpu as pltpu


def _lm_head_kernel_single_k(x_ref, w_ref, b_ref, o_ref):
    # x_ref: (tm, E)   w_ref: (tn, E)  [native (V, E) layout]
    # b_ref: (1, tn) f32   o_ref: (tm, tn)
    acc = jax.lax.dot_general(
        x_ref[...], w_ref[...],
        dimension_numbers=(((1,), (1,)), ((), ())),   # contract E on both sides
        preferred_element_type=jnp.float32)
    o_ref[...] = (acc + b_ref[...]).astype(o_ref.dtype)


def _lm_head_kernel_multi_k(x_ref, w_ref, b_ref, o_ref, acc_ref):
    # x_ref: (tm, tk)   w_ref: (tn, tk)   b_ref: (1, tn) f32
    # o_ref: (tm, tn)   acc_ref: (tm, tn) f32 scratch
    k = pl.program_id(2)

    @pl.when(k == 0)
    def _():
        acc_ref[...] = jnp.zeros_like(acc_ref)

    acc_ref[...] += jax.lax.dot_general(
        x_ref[...], w_ref[...],
        dimension_numbers=(((1,), (1,)), ((), ())),
        preferred_element_type=jnp.float32)

    @pl.when(k == pl.num_programs(2) - 1)
    def _():
        o_ref[...] = (acc_ref[...] + b_ref[...]).astype(o_ref.dtype)


def _round_up(a, m):
    return -(-a // m) * m


def _pick_tiles(M, E, V, itemsize, budget_bytes):
    """Pick (tm, tn, tk) keeping double-buffered tiles inside `budget_bytes`."""
    sub = 8 if itemsize >= 4 else 16          # sublane multiple for the dtype
    tm = min(256, _round_up(M, sub))
    tn = min(512, _round_up(V, 128))          # lane-dense output tiles
    tk = _round_up(E, 128)                    # full E by default -> weight resident

    def footprint(tm_, tn_, tk_):
        ins = 2 * (tm_ * tk_ + tn_ * tk_ + tn_) * itemsize   # double-buffered inputs
        outs = 2 * tm_ * tn_ * itemsize                       # double-buffered output
        return ins + outs + tm_ * tn_ * 4                     # + f32 accumulator

    # Shrink K first (keeps lane-dense output tiles), then N, then M.
    while footprint(tm, tn, tk) > budget_bytes and tk > 128:
        tk = _round_up(tk // 2, 128)
    while footprint(tm, tn, tk) > budget_bytes and tn > 128:
        tn = _round_up(tn // 2, 128)
    while footprint(tm, tn, tk) > budget_bytes and tm > sub:
        tm = _round_up(tm // 2, sub)
    return tm, tn, tk


def lm_head(x, weight, bias, *, compute_dtype=None,
            vmem_budget_bytes=24 * 1024 * 1024):
    """Computes x @ weight.T + bias (torch.nn.Linear semantics).

    x: (..., E)   weight: (V, E)   bias: (V,)   ->   (..., V)
    """
    *lead, E = x.shape
    V, E_w = weight.shape
    assert E_w == E, "weight must be (V, E) like torch.nn.Linear"
    M = 1
    for d in lead:
        M *= d

    out_dtype = x.dtype
    if compute_dtype is not None:
        x = x.astype(compute_dtype)
        weight = weight.astype(compute_dtype)
    itemsize = jnp.dtype(x.dtype).itemsize

    tm, tn, tk = _pick_tiles(M, E, V, itemsize, vmem_budget_bytes)
    Mp, Ep, Vp = _round_up(M, tm), _round_up(E, tk), _round_up(V, tn)

    x2d = x.reshape(M, E)
    if (Mp, Ep) != (M, E):
        x2d = jnp.pad(x2d, ((0, Mp - M), (0, Ep - E)))
    w = weight
    if (Vp, Ep) != (V, E):
        w = jnp.pad(w, ((0, Vp - V), (0, Ep - E)))
    b2d = bias.astype(jnp.float32).reshape(1, V)
    if Vp != V:
        b2d = jnp.pad(b2d, ((0, 0), (0, Vp - V)))

    compiler_params_kwargs = dict(vmem_limit_bytes=48 * 1024 * 1024)

    if Ep == tk:
        # Fast path: single K tile -> no reduction axis, no accumulator scratch.
        # Weight tile index (j, 0) changes only with the outermost axis, so
        # each weight tile is streamed from HBM exactly once per call.
        grid = (Vp // tn, Mp // tm)
        out = pl.pallas_call(
            _lm_head_kernel_single_k,
            out_shape=jax.ShapeDtypeStruct((Mp, Vp), out_dtype),
            grid_spec=pltpu.PrefetchScalarGridSpec(
                num_scalar_prefetch=0,
                grid=grid,
                in_specs=[
                    pl.BlockSpec((tm, tk), lambda j, i: (i, 0)),   # activations
                    pl.BlockSpec((tn, tk), lambda j, i: (j, 0)),   # weight (V, E)
                    pl.BlockSpec((1, tn), lambda j, i: (0, j)),    # bias row (f32)
                ],
                out_specs=pl.BlockSpec((tm, tn), lambda j, i: (i, j)),
            ),
            compiler_params=pltpu.CompilerParams(
                dimension_semantics=("parallel", "parallel"),
                **compiler_params_kwargs,
            ),
        )(x2d, w, b2d)
    else:
        # General path: tiled reduction over E with an f32 VMEM accumulator.
        grid = (Vp // tn, Mp // tm, Ep // tk)
        out = pl.pallas_call(
            _lm_head_kernel_multi_k,
            out_shape=jax.ShapeDtypeStruct((Mp, Vp), out_dtype),
            grid_spec=pltpu.PrefetchScalarGridSpec(
                num_scalar_prefetch=0,
                grid=grid,
                in_specs=[
                    pl.BlockSpec((tm, tk), lambda j, i, k: (i, k)),
                    pl.BlockSpec((tn, tk), lambda j, i, k: (j, k)),
                    pl.BlockSpec((1, tn), lambda j, i, k: (0, j)),
                ],
                out_specs=pl.BlockSpec((tm, tn), lambda j, i, k: (i, j)),
                scratch_shapes=[pltpu.VMEM((tm, tn), jnp.float32)],
            ),
            compiler_params=pltpu.CompilerParams(
                dimension_semantics=("parallel", "parallel", "arbitrary"),
                **compiler_params_kwargs,
            ),
        )(x2d, w, b2d)

    if (Mp, Vp) != (M, V):
        out = out[:M, :V]
    return out.reshape(*lead, V)


if __name__ == "__main__":
    # Small shapes consistent with an LM head: (batch, seq, E) -> (batch, seq, V)
    batch, seq, embedding_size, number_of_tokens = 2, 8, 32, 128

    key = jax.random.PRNGKey(0)
    kx, kw, kb = jax.random.split(key, 3)

    x = jax.random.normal(kx, (batch, seq, embedding_size), dtype=jnp.float32)
    # Deterministic params with torch.nn.Linear(embedding_size, number_of_tokens) shapes.
    bound = 1.0 / (embedding_size ** 0.5)
    weight = jax.random.uniform(kw, (number_of_tokens, embedding_size),
                                minval=-bound, maxval=bound, dtype=jnp.float32)
    bias = jax.random.uniform(kb, (number_of_tokens,),
                              minval=-bound, maxval=bound, dtype=jnp.float32)

    out = lm_head(x, weight, bias)
    out = jax.block_until_ready(out)

    # Reference check against plain JAX (same math as torch.nn.Linear).
    ref = x @ weight.T + bias
    assert out.shape == (batch, seq, number_of_tokens)
    assert jnp.allclose(out, ref, atol=1e-5, rtol=1e-5), \
        float(jnp.max(jnp.abs(out - ref)))

    print("KERNEL_OK")
</pallas_src>

<mosaic_0001>
module attributes {stable_mosaic.version = 11 : i64} {
  func.func @_lm_head_kernel_single_k(%arg0: i32, %arg1: i32, %arg2: memref<16x128xf32, #tpu.memory_space<vmem>>, %arg3: memref<128x128xf32, #tpu.memory_space<vmem>>, %arg4: memref<1x128xf32, #tpu.memory_space<vmem>>, %arg5: memref<16x128xf32, #tpu.memory_space<vmem>>) attributes {dimension_semantics = [#tpu.dimension_semantics<parallel>, #tpu.dimension_semantics<parallel>], iteration_bounds = array<i64: 1, 1>, scalar_prefetch = 0 : i64, scratch_operands = 0 : i64, tpu.core_type = #tpu.core_type<tc>, window_params = [{transform_indices = @transform_0, window_bounds = array<i64: 16, 128>}, {transform_indices = @transform_1, window_bounds = array<i64: 128, 128>}, {transform_indices = @transform_2, window_bounds = array<i64: 1, 128>}, {transform_indices = @transform_3, window_bounds = array<i64: 16, 128>}]} {
    %c0 = arith.constant 0 : index
    %c0_0 = arith.constant 0 : index
    %0 = vector.load %arg2[%c0, %c0_0] : memref<16x128xf32, #tpu.memory_space<vmem>>, vector<16x128xf32>
    %c0_1 = arith.constant 0 : index
    %c0_2 = arith.constant 0 : index
    %1 = vector.load %arg3[%c0_1, %c0_2] : memref<128x128xf32, #tpu.memory_space<vmem>>, vector<128x128xf32>
    %cst = arith.constant dense<0.000000e+00> : vector<16x128xf32>
    %2 = tpu.matmul %0, %1, %cst {dimension_numbers = #tpu.dot_dimension_numbers<[1], [1], [0], [0], [0, 0, 1, 0], [], []>} : vector<16x128xf32>, vector<128x128xf32>, vector<16x128xf32> -> vector<16x128xf32>
    %c0_3 = arith.constant 0 : index
    %c0_4 = arith.constant 0 : index
    %3 = vector.load %arg4[%c0_3, %c0_4] : memref<1x128xf32, #tpu.memory_space<vmem>>, vector<1x128xf32>
    %4 = vector.broadcast %3 : vector<1x128xf32> to vector<16x128xf32>
    %5 = arith.addf %2, %4 : vector<16x128xf32>
    %c0_5 = arith.constant 0 : index
    %c0_6 = arith.constant 0 : index
    %6 = vector.load %arg5[%c0_5, %c0_6] : memref<16x128xf32, #tpu.memory_space<vmem>>, vector<16x128xf32>
    tpu.vector_store %arg5[%c0_5, %c0_6], %5 {strides = array<i32>} : memref<16x128xf32, #tpu.memory_space<vmem>>, vector<16x128xf32>,
    return
  }
  func.func @transform_0(%arg0: i32, %arg1: i32) -> (i32, i32) {
    %c0_i32 = arith.constant 0 : i32
    %c0_i32_0 = arith.constant 0 : i32
    return %arg1, %c0_i32 : i32, i32
  }
  func.func @transform_1(%arg0: i32, %arg1: i32) -> (i32, i32) {
    %c0_i32 = arith.constant 0 : i32
    %c0_i32_0 = arith.constant 0 : i32
    return %arg0, %c0_i32 : i32, i32
  }
  func.func @transform_2(%arg0: i32, %arg1: i32) -> (i32, i32) {
    %c0_i32 = arith.constant 0 : i32
    %c0_i32_0 = arith.constant 0 : i32
    return %c0_i32, %arg0 : i32, i32
  }
  func.func @transform_3(%arg0: i32, %arg1: i32) -> (i32, i32) {
    %c0_i32 = arith.constant 0 : i32
    return %arg1, %arg0 : i32, i32
  }
}

</mosaic_0001>

<llo_original>
// kernel: tpu_custom_call.1
$region0: #{tpu_custom_call.1}
  #allocation0 [shape = 'u32[]', space=smem, size = 0x4, offset = 0x4, fixed_abs, tag = 'smem constant byte address 0x4 - core index']
  #allocation1 [shape = 'u32[144,128]{1,0:T(1,128)}', space=vmem, size = 0x12000, scoped, tag = 'internal scratch']
  %s0 = inlined_call_operand.hbm [shape: f32[16,128], index: 0, kind: input, shape index: {}]
  %s1 = inlined_call_operand.hbm [shape: f32[128,128], index: 1, kind: input, shape index: {}]
  %s2 = inlined_call_operand.vmem [shape: f32[1,128], index: 2, kind: input, shape index: {}]
  %s3 = inlined_call_operand.hbm [shape: f32[16,128], index: 3, kind: output, shape index: {}]
  %s4 = sld [smem:[#allocation0]]
  $region30: #{tpu_custom_call.1} parent=0
    _
  %s6 = ssub.s32 1, %s4
  %s7 = scalar_select 0, %s6, %s4
  $region1: #{tpu_custom_call.1} parent=0
    #allocation2 [shape = 'u8[8192]{0}', space=vmem, size = 0x2000, scoped, tag = 'input window, operand 0, single buffered']
    #allocation3 [shape = 's32[1]{0}', space=sflag, size = 0x4, scoped, tag = 'scoped memory for tpu_custom_call.1']
    #allocation4 [shape = 's32[1]{0}', space=sflag, size = 0x4, scoped, tag = 'scoped memory for tpu_custom_call.1']
    #allocation5 [shape = 'u8[65536]{0}', space=vmem, size = 0x10000, scoped, tag = 'input window, operand 1, single buffered']
    #allocation6 [shape = 's32[1]{0}', space=sflag, size = 0x4, scoped, tag = 'scoped memory for tpu_custom_call.1']
    #allocation7 [shape = 'u8[8192]{0}', space=vmem, size = 0x2000, scoped, tag = 'output window, operand 0, single buffered']
    %8 = vsyncpa [#allocation3], 0
    %9 = vsyncpa [#allocation6], 0
    %10 = vsyncpa [#allocation4], 0
    // Predicated region
    $region2: #{tpu_custom_call.1} parent=1 // pred_check
      _
    $region3: #{tpu_custom_call.1} parent=1 // pred_check_branch
      %12 = sbr.rel (0) target = $region5
    $region4: #{tpu_custom_call.1} parent=1 // pred_region
      %s14 = ssub.s32 256, 256
      %15 = vsyncadd [#allocation3], %s14
      %s16 = sshll.u32 [#allocation2], 4
      %s17 = int_to_ptr.vmem [resolvable:$true] %s16
      %22 = dma.hbm_to_vmem [thread:$0]  %s0, 256, %s17, [#allocation3], 128, 128, 8
    $region5: #{tpu_custom_call.1} parent=1 // pred_fallthru
      _
    // Predicated region
    $region6: #{tpu_custom_call.1} parent=1 // pred_check
      _
    $region7: #{tpu_custom_call.1} parent=1 // pred_check_branch
      %24 = sbr.rel (0) target = $region9
    $region8: #{tpu_custom_call.1} parent=1 // pred_region
      %s26 = ssub.s32 2048, 2048
      %27 = vsyncadd [#allocation6], %s26
      %s28 = sshll.u32 [#allocation5], 4
      %s29 = int_to_ptr.vmem [resolvable:$true] %s28
      %34 = dma.hbm_to_vmem [thread:$0]  %s1, 2048, %s29, [#allocation6], 128, 128, 8
    $region9: #{tpu_custom_call.1} parent=1 // pred_fallthru
      _
    // Predicated region
    $region10: #{tpu_custom_call.1} parent=1 // pred_check
      _
    $region11: #{tpu_custom_call.1} parent=1 // pred_check_branch
      %36 = sbr.rel (0) target = $region13
    $region12: #{tpu_custom_call.1} parent=1 // pred_region
      _
    $region13: #{tpu_custom_call.1} parent=1 // pred_fallthru
      _
    // Predicated region
    $region14: #{tpu_custom_call.1} parent=1 // pred_check
      _
    $region15: #{tpu_custom_call.1} parent=1 // pred_check_branch
      %38 = sbr.rel (0) target = $region17
    $region16: #{tpu_custom_call.1} parent=1 // pred_region
      %39 = dma.done [#allocation3], 256
    $region17: #{tpu_custom_call.1} parent=1 // pred_fallthru
      _
    // Predicated region
    $region18: #{tpu_custom_call.1} parent=1 // pred_check
      _
    $region19: #{tpu_custom_call.1} parent=1 // pred_check_branch
      %41 = sbr.rel (0) target = $region21
    $region20: #{tpu_custom_call.1} parent=1 // pred_region
      %42 = dma.done [#allocation6], 2048
    $region21: #{tpu_custom_call.1} parent=1 // pred_fallthru
      _
    %v43 = vld [vmem:[#allocation2] sm:$0xff]
    %v44 = vld [vmem:[#allocation2 + $0x8] sm:$0xff]
    %v45 = vld [vmem:[#allocation5] sm:$0xff]
    %v46 = vld [vmem:[#allocation5 + $0x8] sm:$0xff]
    %v47 = vld [vmem:[#allocation5 + $0x10] sm:$0xff]
    %v48 = vld [vmem:[#allocation5 + $0x18] sm:$0xff]
    %v49 = vld [vmem:[#allocation5 + $0x20] sm:$0xff]
    %v50 = vld [vmem:[#allocation5 + $0x28] sm:$0xff]
    %v51 = vld [vmem:[#allocation5 + $0x30] sm:$0xff]
    %v52 = vld [vmem:[#allocation5 + $0x38] sm:$0xff]
    %v53 = vld [vmem:[#allocation5 + $0x40] sm:$0xff]
    %v54 = vld [vmem:[#allocation5 + $0x48] sm:$0xff]
    %v55 = vld [vmem:[#allocation5 + $0x50] sm:$0xff]
    %v56 = vld [vmem:[#allocation5 + $0x58] sm:$0xff]
    %v57 = vld [vmem:[#allocation5 + $0x60] sm:$0xff]
    %v58 = vld [vmem:[#allocation5 + $0x68] sm:$0xff]
    %v59 = vld [vmem:[#allocation5 + $0x70] sm:$0xff]
    %v60 = vld [vmem:[#allocation5 + $0x78] sm:$0xff]
    %v61 = vld [vmem:[%s2] sm:$0x1]
    %v63 = vlaneseq
    %v64 = vshrl.u32 %v63, 7
    %v65 = vsub.s32 0, %v64
    %v66 = vrot.slane %v61, %v65
    %68 = vmatprep.subr.mxu0 0.0
    %69 = vmatpush1.xpose.msra.mxu0 %v45
    %70 = vmatprep.subr.mxu0 0.0
    %71 = vmatpush1.xpose.msra.mxu0 %v46
    %72 = vmatprep.subr.mxu0 0.0
    %73 = vmatpush1.xpose.msra.mxu0 %v47
    %74 = vmatprep.subr.mxu0 0.0
    %75 = vmatpush1.xpose.msra.mxu0 %v48
    %76 = vmatprep.subr.mxu0 0.0
    %77 = vmatpush1.xpose.msra.mxu0 %v49
    %78 = vmatprep.subr.mxu0 0.0
    %79 = vmatpush1.xpose.msra.mxu0 %v50
    %80 = vmatprep.subr.mxu0 0.0
    %81 = vmatpush1.xpose.msra.mxu0 %v51
    %82 = vmatprep.subr.mxu0 0.0
    %83 = vmatpush1.xpose.msra.mxu0 %v52
    %84 = vmatprep.subr.mxu0 0.0
    %85 = vmatpush1.xpose.msra.mxu0 %v53
    %86 = vmatprep.subr.mxu0 0.0
    %87 = vmatpush1.xpose.msra.mxu0 %v54
    %88 = vmatprep.subr.mxu0 0.0
    %89 = vmatpush1.xpose.msra.mxu0 %v55
    %90 = vmatprep.subr.mxu0 0.0
    %91 = vmatpush1.xpose.msra.mxu0 %v56
    %92 = vmatprep.subr.mxu0 0.0
    %93 = vmatpush1.xpose.msra.mxu0 %v57
    %94 = vmatprep.subr.mxu0 0.0
    %95 = vmatpush1.xpose.msra.mxu0 %v58
    %96 = vmatprep.subr.mxu0 0.0
    %97 = vmatpush1.xpose.msra.mxu0 %v59
    %98 = vmatprep.subr.mxu0 0.0
    %99 = vmatpush1.xpose.msra.mxu0 %v60
    %100 = vmatprep.subr.mxu0 0.0
    %101 = vmatpush1.xpose.msra.mxu0 0.0
    %102 = vmatprep.subr.mxu0 0.0
    %103 = vmatpush1.xpose.msra.mxu0 0.0
    %104 = vmatprep.subr.mxu0 0.0
    %105 = vmatpush1.xpose.msra.mxu0 0.0
    %106 = vmatprep.subr.mxu0 0.0
    %107 = vmatpush1.xpose.msra.mxu0 0.0
    %108 = vmatprep.subr.mxu0 0.0
    %109 = vmatpush1.xpose.msra.mxu0 0.0
    %110 = vmatprep.subr.mxu0 0.0
    %111 = vmatpush1.xpose.msra.mxu0 0.0
    %112 = vmatprep.subr.mxu0 0.0
    %113 = vmatpush1.xpose.msra.mxu0 0.0
    %114 = vmatprep.subr.mxu0 0.0
    %115 = vmatpush1.xpose.msra.mxu0 0.0
    %116 = vmatprep.subr.mxu0 0.0
    %117 = vmatpush1.xpose.msra.mxu0 0.0
    %118 = vmatprep.subr.mxu0 0.0
    %119 = vmatpush1.xpose.msra.mxu0 0.0
    %120 = vmatprep.subr.mxu0 0.0
    %121 = vmatpush1.xpose.msra.mxu0 0.0
    %122 = vmatprep.subr.mxu0 0.0
    %123 = vmatpush1.xpose.msra.mxu0 0.0
    %124 = vmatprep.subr.mxu0 0.0
    %125 = vmatpush1.xpose.msra.mxu0 0.0
    %126 = vmatprep.subr.mxu0 0.0
    %127 = vmatpush1.xpose.msra.mxu0 0.0
    %128 = vmatprep.subr.mxu0 0.0
    %129 = vmatpush1.xpose.msra.mxu0 0.0
    %130 = vmatprep.subr.mxu0 0.0
    %131 = vmatpush1.xpose.msra.mxu0 0.0
    %132 = vmatprep.mubr.f32.mxu0 0.0
    %133 = vmatmul.mubr.f32.gmra.mrb[0].mxu0 %v43
    %v134 = vpop.f32.mrb[0].mxu0
    %v135 = vadd.f32 %v66, %v134
    %v136 = vpop.f32.mrb[0].mxu0
    %137 = vmatprep.mubr.f32.mxu0 0.0
    %138 = vmatmul.mubr.f32.gmra.mrb[0].mxu0 %v44
    %v139 = vpop.f32.mrb[0].mxu0
    %v140 = vadd.f32 %v66, %v139
    %v141 = vpop.f32.mrb[0].mxu0
    %142 = vdwg.mxu0
    %143 = vst [vmem:[#allocation7] sm:$0xff] %v135
    %144 = vst [vmem:[#allocation7 + $0x8] sm:$0xff] %v140
    // Predicated region
    $region22: #{tpu_custom_call.1} parent=1 // pred_check
      _
    $region23: #{tpu_custom_call.1} parent=1 // pred_check_branch
      %146 = sbr.rel (0) target = $region25
    $region24: #{tpu_custom_call.1} parent=1 // pred_region
      %s148 = ssub.s32 256, 256
      %149 = vsyncadd [#allocation4], %s148
      %s150 = sshll.u32 [#allocation7], 4
      %s151 = int_to_ptr.vmem [resolvable:$true] %s150
      %156 = dma.vmem_to_hbm [thread:$0]  %s151, 256, %s3, [#allocation4], 128, 128, 8
    $region25: #{tpu_custom_call.1} parent=1 // pred_fallthru
      _
    // Predicated region
    $region26: #{tpu_custom_call.1} parent=1 // pred_check
      _
    $region27: #{tpu_custom_call.1} parent=1 // pred_check_branch
      %158 = sbr.rel (0) target = $region29
    $region28: #{tpu_custom_call.1} parent=1 // pred_region
      %159 = dma.done [#allocation4], 256
    $region29: #{tpu_custom_call.1} parent=1 // pred_fallthru
      _
    %160 = vsyncpa [#allocation3], 1
    %161 = vsyncpa [#allocation6], 1
    %162 = vsyncpa [#allocation4], 1

</llo_original>
